<compile_context>
chip_gen: v5e
topology: v5e:2x2
jax: 0.10.0
libtpu: 0.0.40
codegen_flags: <defaults>
</compile_context>

<pallas_src>
import math

import jax
import jax.numpy as jnp
from jax.experimental import pallas as pl
from jax.experimental.pallas import tpu as pltpu


def _lm_head_kernel(x_ref, w_ref, o_ref):
    """One (tm, tn) output tile: full-K matmul, f32 MXU accumulation."""
    o_ref[...] = jnp.dot(
        x_ref[...], w_ref[...], preferred_element_type=jnp.float32
    ).astype(o_ref.dtype)


def _pick_tile(dim, target, align):
    """Largest multiple of `align` that divides `dim` and is <= target.

    Falls back to the full dimension (always a legal block) if no such
    divisor exists or the dim is already <= target.
    """
    if dim <= target:
        return dim
    t = (target // align) * align
    while t >= align:
        if dim % t == 0:
            return t
        t -= align
    return dim


def lm_head_matmul(x, w, *, out_dtype=jnp.bfloat16,
                   w_block_bytes=8 * 1024 * 1024, max_tn=2048, max_tm=256):
    """x: [M, K], w: [K, N] -> [M, N] via a tiled Pallas MXU matmul.

    K is taken as a single block (no reduction grid axis).  The N (vocab)
    tile targets ~`w_block_bytes` of weight per block; M tiles at up to
    `max_tm` rows (full M for small/decode batches).
    """
    M, K = x.shape
    K2, N = w.shape
    assert K == K2

    itemsize = jnp.dtype(w.dtype).itemsize
    tn_target = max(128, min(max_tn, w_block_bytes // max(1, K * itemsize)))
    tn = _pick_tile(N, tn_target, 128)
    tm = _pick_tile(M, max_tm, 8)

    grid = (N // tn, M // tm)  # vocab axis leading, row axis innermost

    # Double-buffered x / w / out blocks plus headroom; fits v7x's 64 MiB VMEM.
    block_bytes = (tm * K + K * tn + tm * tn) * 4
    vmem_limit = min(100 * 1024 * 1024, max(32 * 1024 * 1024, 3 * block_bytes))

    return pl.pallas_call(
        _lm_head_kernel,
        out_shape=jax.ShapeDtypeStruct((M, N), out_dtype),
        grid_spec=pltpu.PrefetchScalarGridSpec(
            num_scalar_prefetch=0,
            grid=grid,
            in_specs=[
                pl.BlockSpec((tm, K), lambda j, i: (i, 0)),
                pl.BlockSpec((K, tn), lambda j, i: (0, j)),
            ],
            out_specs=pl.BlockSpec((tm, tn), lambda j, i: (i, j)),
        ),
        compiler_params=pltpu.CompilerParams(
            dimension_semantics=("parallel", "parallel"),
            vmem_limit_bytes=vmem_limit,
        ),
    )(x, w)


class LMHeadPallas:
    """JAX/Pallas re-implementation of the TTNN LMHead forward pass.

    The original module computes two vocab splits with separate linears and
    concatenates them; here the splits are fused into one weight and a single
    Pallas matmul produces the full [tokens, vocab] logits directly.
    """

    def __init__(self, hidden_dim, vocab_size, *, num_splits=2,
                 dtype=jnp.bfloat16, key=None):
        assert vocab_size % num_splits == 0
        self.hidden_dim = hidden_dim
        self.vocab_size = vocab_size
        self.num_splits = num_splits  # kept for structural parity; splits are fused
        self.dtype = dtype

        if key is None:
            key = jax.random.PRNGKey(0)
        # state_dict["output.weight"] has shape (vocab_size, hidden_dim);
        # the module permutes it to (hidden_dim, vocab_size).
        output_weight = jax.random.normal(
            key, (vocab_size, hidden_dim), dtype=jnp.float32
        ) * (1.0 / math.sqrt(hidden_dim))
        # [hidden, vocab], vocab on the lane axis.
        self.weight = jnp.transpose(output_weight, (1, 0)).astype(dtype)

    def __call__(self, x):
        # x: [tokens, hidden] -> [tokens, vocab]
        return lm_head_matmul(x.astype(self.dtype), self.weight,
                              out_dtype=self.dtype)


if __name__ == "__main__":
    # Small shapes consistent with the module's forward (LM head at decode):
    # tokens = batch*seq, hidden dim, vocab split 2 ways.
    tokens = 32
    hidden = 64
    vocab = 512

    key = jax.random.PRNGKey(0)
    kx, kw = jax.random.split(key)

    x = jax.random.normal(kx, (tokens, hidden), dtype=jnp.float32).astype(jnp.bfloat16)

    head = LMHeadPallas(hidden, vocab, num_splits=2, dtype=jnp.bfloat16, key=kw)

    out = head(x)
    out = jax.block_until_ready(out)

    # Reference check (plain JAX).
    ref = jnp.dot(x.astype(jnp.float32), head.weight.astype(jnp.float32))
    err = jnp.max(jnp.abs(out.astype(jnp.float32) - ref))
    assert out.shape == (tokens, vocab)
    assert float(err) < 1e-1, f"max abs error too large: {err}"

    print("KERNEL_OK")
</pallas_src>

<mosaic_0001>
module attributes {stable_mosaic.version = 11 : i64} {
  func.func @_lm_head_kernel(%arg0: i32, %arg1: i32, %arg2: memref<32x64xbf16, #tpu.memory_space<vmem>>, %arg3: memref<64x512xbf16, #tpu.memory_space<vmem>>, %arg4: memref<32x512xbf16, #tpu.memory_space<vmem>>) attributes {dimension_semantics = [#tpu.dimension_semantics<parallel>, #tpu.dimension_semantics<parallel>], iteration_bounds = array<i64: 1, 1>, scalar_prefetch = 0 : i64, scratch_operands = 0 : i64, tpu.core_type = #tpu.core_type<tc>, window_params = [{transform_indices = @transform_0, window_bounds = array<i64: 32, 64>}, {transform_indices = @transform_1, window_bounds = array<i64: 64, 512>}, {transform_indices = @transform_2, window_bounds = array<i64: 32, 512>}]} {
    %c0 = arith.constant 0 : index
    %c0_0 = arith.constant 0 : index
    %0 = vector.load %arg2[%c0, %c0_0] : memref<32x64xbf16, #tpu.memory_space<vmem>>, vector<32x64xbf16>
    %c0_1 = arith.constant 0 : index
    %c0_2 = arith.constant 0 : index
    %1 = vector.load %arg3[%c0_1, %c0_2] : memref<64x512xbf16, #tpu.memory_space<vmem>>, vector<64x512xbf16>
    %cst = arith.constant dense<0.000000e+00> : vector<32x512xf32>
    %2 = tpu.matmul %0, %1, %cst {dimension_numbers = #tpu.dot_dimension_numbers<[1], [0], [0], [1], [0, 0, 1, 1], [], []>} : vector<32x64xbf16>, vector<64x512xbf16>, vector<32x512xf32> -> vector<32x512xf32>
    %3 = arith.truncf %2 : vector<32x512xf32> to vector<32x512xbf16>
    %c0_3 = arith.constant 0 : index
    %c0_4 = arith.constant 0 : index
    %4 = vector.load %arg4[%c0_3, %c0_4] : memref<32x512xbf16, #tpu.memory_space<vmem>>, vector<32x512xbf16>
    tpu.vector_store %arg4[%c0_3, %c0_4], %3 {strides = array<i32>} : memref<32x512xbf16, #tpu.memory_space<vmem>>, vector<32x512xbf16>,
    return
  }
  func.func @transform_0(%arg0: i32, %arg1: i32) -> (i32, i32) {
    %c0_i32 = arith.constant 0 : i32
    %c0_i32_0 = arith.constant 0 : i32
    return %arg1, %c0_i32 : i32, i32
  }
  func.func @transform_1(%arg0: i32, %arg1: i32) -> (i32, i32) {
    %c0_i32 = arith.constant 0 : i32
    %c0_i32_0 = arith.constant 0 : i32
    return %c0_i32, %arg0 : i32, i32
  }
  func.func @transform_2(%arg0: i32, %arg1: i32) -> (i32, i32) {
    %c0_i32 = arith.constant 0 : i32
    return %arg1, %arg0 : i32, i32
  }
}

</mosaic_0001>

<llo_original>
// kernel: tpu_custom_call.1
$region0: #{tpu_custom_call.1}
  #allocation0 [shape = 'u32[]', space=smem, size = 0x4, offset = 0x4, fixed_abs, tag = 'smem constant byte address 0x4 - core index']
  #allocation1 [shape = 'u32[72,128]{1,0:T(1,128)}', space=vmem, size = 0x9000, scoped, tag = 'internal scratch']
  %s0 = inlined_call_operand.hbm [shape: bf16[32,64], index: 0, kind: input, shape index: {}]
  %s1 = inlined_call_operand.hbm [shape: bf16[64,512], index: 1, kind: input, shape index: {}]
  %s2 = inlined_call_operand.hbm [shape: bf16[32,512], index: 2, kind: output, shape index: {}]
  %s3 = sld [smem:[#allocation0]]
  $region26: #{tpu_custom_call.1} parent=0
    _
  %s5 = ssub.s32 1, %s3
  %s6 = scalar_select 0, %s5, %s3
  $region1: #{tpu_custom_call.1} parent=0
    #allocation2 [shape = 'u8[8192]{0}', space=vmem, size = 0x2000, scoped, tag = 'input window, operand 0, single buffered']
    #allocation3 [shape = 's32[1]{0}', space=sflag, size = 0x4, scoped, tag = 'scoped memory for tpu_custom_call.1']
    #allocation4 [shape = 's32[1]{0}', space=sflag, size = 0x4, scoped, tag = 'scoped memory for tpu_custom_call.1']
    #allocation5 [shape = 'u8[65536]{0}', space=vmem, size = 0x10000, scoped, tag = 'input window, operand 1, single buffered']
    #allocation6 [shape = 's32[1]{0}', space=sflag, size = 0x4, scoped, tag = 'scoped memory for tpu_custom_call.1']
    #allocation7 [shape = 'u8[32768]{0}', space=vmem, size = 0x8000, scoped, tag = 'output window, operand 0, single buffered']
    %7 = vsyncpa [#allocation3], 0
    %8 = vsyncpa [#allocation6], 0
    %9 = vsyncpa [#allocation4], 0
    // Predicated region
    $region2: #{tpu_custom_call.1} parent=1 // pred_check
      _
    $region3: #{tpu_custom_call.1} parent=1 // pred_check_branch
      %11 = sbr.rel (0) target = $region5
    $region4: #{tpu_custom_call.1} parent=1 // pred_region
      %13 = vsyncadd [#allocation3], 0
      %s14 = sshll.u32 %s0, 4
      %s15 = int_to_ptr.hbm [resolvable:$true] %s14
      %s16 = sshll.u32 [#allocation2], 4
      %s17 = int_to_ptr.vmem [resolvable:$true] %s16
      %22 = dma.hbm_to_vmem [thread:$0]  %s15, 256, %s17, [#allocation3], 64, 64, 4
    $region5: #{tpu_custom_call.1} parent=1 // pred_fallthru
      _
    // Predicated region
    $region6: #{tpu_custom_call.1} parent=1 // pred_check
      _
    $region7: #{tpu_custom_call.1} parent=1 // pred_check_branch
      %24 = sbr.rel (0) target = $region9
    $region8: #{tpu_custom_call.1} parent=1 // pred_region
      %26 = vsyncadd [#allocation6], 0
      %s27 = sshll.u32 %s1, 4
      %s28 = int_to_ptr.hbm [resolvable:$true] %s27
      %s29 = sshll.u32 [#allocation5], 4
      %s30 = int_to_ptr.vmem [resolvable:$true] %s29
      %35 = dma.hbm_to_vmem [thread:$0]  %s28, 2048, %s30, [#allocation6], 256, 256, 16
    $region9: #{tpu_custom_call.1} parent=1 // pred_fallthru
      _
    // Predicated region
    $region10: #{tpu_custom_call.1} parent=1 // pred_check
      _
    $region11: #{tpu_custom_call.1} parent=1 // pred_check_branch
      %37 = sbr.rel (0) target = $region13
    $region12: #{tpu_custom_call.1} parent=1 // pred_region
      %39 = dma.done [#allocation3], 256
    $region13: #{tpu_custom_call.1} parent=1 // pred_fallthru
      _
    // Predicated region
    $region14: #{tpu_custom_call.1} parent=1 // pred_check
      _
    $region15: #{tpu_custom_call.1} parent=1 // pred_check_branch
      %41 = sbr.rel (0) target = $region17
    $region16: #{tpu_custom_call.1} parent=1 // pred_region
      %43 = dma.done [#allocation6], 2048
    $region17: #{tpu_custom_call.1} parent=1 // pred_fallthru
      _
    %v45 = vld [vmem:[#allocation2] sm:$0xf]
    %v46 = vld [vmem:[#allocation2 + $0x4] sm:$0xf]
    %v47 = vld [vmem:[#allocation2 + $0x8] sm:$0xf]
    %v48 = vld [vmem:[#allocation2 + $0xc] sm:$0xf]
    %v49 = vld [vmem:[#allocation5] sm:$0xff]
    %v50 = vld [vmem:[#allocation5 + $0x8] sm:$0xff]
    %v51 = vld [vmem:[#allocation5 + $0x10] sm:$0xff]
    %v52 = vld [vmem:[#allocation5 + $0x18] sm:$0xff]
    %v53 = vld [vmem:[#allocation5 + $0x20] sm:$0xff]
    %v54 = vld [vmem:[#allocation5 + $0x28] sm:$0xff]
    %v55 = vld [vmem:[#allocation5 + $0x30] sm:$0xff]
    %v56 = vld [vmem:[#allocation5 + $0x38] sm:$0xff]
    %v57 = vld [vmem:[#allocation5 + $0x40] sm:$0xff]
    %v58 = vld [vmem:[#allocation5 + $0x48] sm:$0xff]
    %v59 = vld [vmem:[#allocation5 + $0x50] sm:$0xff]
    %v60 = vld [vmem:[#allocation5 + $0x58] sm:$0xff]
    %v61 = vld [vmem:[#allocation5 + $0x60] sm:$0xff]
    %v62 = vld [vmem:[#allocation5 + $0x68] sm:$0xff]
    %v63 = vld [vmem:[#allocation5 + $0x70] sm:$0xff]
    %v64 = vld [vmem:[#allocation5 + $0x78] sm:$0xff]
    %v69 = vunpack.c.l.b16 %v45
    %v70 = vunpack.c.l.b16 %v46
    %v71 = vunpack.c.l.b16 %v47
    %v72 = vunpack.c.l.b16 %v48
    %v73 = vpack.c.b16 %v70, %v69
    %v74 = vpack.c.b16 %v72, %v71
    %v91 = vunpack.c.l.b16 %v49
    %v92 = vunpack.c.h.b16 %v49
    %v93 = vunpack.c.l.b16 %v50
    %v94 = vunpack.c.h.b16 %v50
    %v95 = vunpack.c.l.b16 %v51
    %v96 = vunpack.c.h.b16 %v51
    %v97 = vunpack.c.l.b16 %v52
    %v98 = vunpack.c.h.b16 %v52
    %v99 = vunpack.c.l.b16 %v53
    %v100 = vunpack.c.h.b16 %v53
    %v101 = vunpack.c.l.b16 %v54
    %v102 = vunpack.c.h.b16 %v54
    %v103 = vunpack.c.l.b16 %v55
    %v104 = vunpack.c.h.b16 %v55
    %v105 = vunpack.c.l.b16 %v56
    %v106 = vunpack.c.h.b16 %v56
    %v107 = vunpack.c.l.b16 %v57
    %v108 = vunpack.c.h.b16 %v57
    %v109 = vunpack.c.l.b16 %v58
    %v110 = vunpack.c.h.b16 %v58
    %v111 = vunpack.c.l.b16 %v59
    %v112 = vunpack.c.h.b16 %v59
    %v113 = vunpack.c.l.b16 %v60
    %v114 = vunpack.c.h.b16 %v60
    %v115 = vunpack.c.l.b16 %v61
    %v116 = vunpack.c.h.b16 %v61
    %v117 = vunpack.c.l.b16 %v62
    %v118 = vunpack.c.h.b16 %v62
    %v119 = vunpack.c.l.b16 %v63
    %v120 = vunpack.c.h.b16 %v63
    %v121 = vunpack.c.l.b16 %v64
    %v122 = vunpack.c.h.b16 %v64
    %v123 = vpack.c.b16 %v95, %v91
    %v124 = vpack.c.b16 %v96, %v92
    %v125 = vpack.c.b16 %v97, %v93
    %v126 = vpack.c.b16 %v98, %v94
    %v127 = vpack.c.b16 %v103, %v99
    %v128 = vpack.c.b16 %v104, %v100
    %v129 = vpack.c.b16 %v105, %v101
    %v130 = vpack.c.b16 %v106, %v102
    %v131 = vpack.c.b16 %v111, %v107
    %v132 = vpack.c.b16 %v112, %v108
    %v133 = vpack.c.b16 %v113, %v109
    %v134 = vpack.c.b16 %v114, %v110
    %v135 = vpack.c.b16 %v119, %v115
    %v136 = vpack.c.b16 %v120, %v116
    %v137 = vpack.c.b16 %v121, %v117
    %v138 = vpack.c.b16 %v122, %v118
    %vm155 = vcmask 523264
    %v157 = vsel %vm155, %v73, 0
    %v160 = vsel %vm155, %v74, 0
    %162 = vmatpush.bf16.msra.mxu0 0
    %163 = vmatpush.bf16.msra.mxu0 0
    %164 = vmatpush.bf16.msra.mxu0 0
    %165 = vmatpush.bf16.msra.mxu0 0
    %166 = vmatpush.bf16.msra.mxu0 %v135
    %167 = vmatpush.bf16.msra.mxu0 %v131
    %168 = vmatpush.bf16.msra.mxu0 %v127
    %169 = vmatpush.bf16.msra.mxu0 %v123
    %170 = vmatmul.bf16.gmra.mxu0 %v157
    %v171 = vpop.f32.mrf.mxu0
    %v172 = vadd.f32 0.0, %v171
    %v173 = vpop.f32.mrf.mxu0
    %v174 = vadd.f32 0.0, %v173
    %175 = vmatmul.bf16.gmra.mxu0 %v160
    %v176 = vpop.f32.mrf.mxu0
    %v177 = vadd.f32 0.0, %v176
    %v178 = vpop.f32.mrf.mxu0
    %v179 = vadd.f32 0.0, %v178
    %180 = vdwg.mxu0
    %181 = vmatpush.bf16.msra.mxu0 0
    %182 = vmatpush.bf16.msra.mxu0 0
    %183 = vmatpush.bf16.msra.mxu0 0
    %184 = vmatpush.bf16.msra.mxu0 0
    %185 = vmatpush.bf16.msra.mxu0 %v136
    %186 = vmatpush.bf16.msra.mxu0 %v132
    %187 = vmatpush.bf16.msra.mxu0 %v128
    %188 = vmatpush.bf16.msra.mxu0 %v124
    %189 = vmatmul.bf16.gmra.mxu0 %v157
    %v190 = vpop.f32.mrf.mxu0
    %v191 = vadd.f32 0.0, %v190
    %v192 = vpop.f32.mrf.mxu0
    %v193 = vadd.f32 0.0, %v192
    %194 = vmatmul.bf16.gmra.mxu0 %v160
    %v195 = vpop.f32.mrf.mxu0
    %v196 = vadd.f32 0.0, %v195
    %v197 = vpop.f32.mrf.mxu0
    %v198 = vadd.f32 0.0, %v197
    %199 = vdwg.mxu0
    %200 = vmatpush.bf16.msra.mxu0 0
    %201 = vmatpush.bf16.msra.mxu0 0
    %202 = vmatpush.bf16.msra.mxu0 0
    %203 = vmatpush.bf16.msra.mxu0 0
    %204 = vmatpush.bf16.msra.mxu0 %v137
    %205 = vmatpush.bf16.msra.mxu0 %v133
    %206 = vmatpush.bf16.msra.mxu0 %v129
    %207 = vmatpush.bf16.msra.mxu0 %v125
    %208 = vmatmul.bf16.gmra.mxu0 %v157
    %v209 = vpop.f32.mrf.mxu0
    %v210 = vadd.f32 0.0, %v209
    %v211 = vpop.f32.mrf.mxu0
    %v212 = vadd.f32 0.0, %v211
    %213 = vmatmul.bf16.gmra.mxu0 %v160
    %v214 = vpop.f32.mrf.mxu0
    %v215 = vadd.f32 0.0, %v214
    %v216 = vpop.f32.mrf.mxu0
    %v217 = vadd.f32 0.0, %v216
    %218 = vdwg.mxu0
    %219 = vmatpush.bf16.msra.mxu0 0
    %220 = vmatpush.bf16.msra.mxu0 0
    %221 = vmatpush.bf16.msra.mxu0 0
    %222 = vmatpush.bf16.msra.mxu0 0
    %223 = vmatpush.bf16.msra.mxu0 %v138
    %224 = vmatpush.bf16.msra.mxu0 %v134
    %225 = vmatpush.bf16.msra.mxu0 %v130
    %226 = vmatpush.bf16.msra.mxu0 %v126
    %227 = vmatmul.bf16.gmra.mxu0 %v157
    %v228 = vpop.f32.mrf.mxu0
    %v229 = vadd.f32 0.0, %v228
    %v230 = vpop.f32.mrf.mxu0
    %v231 = vadd.f32 0.0, %v230
    %232 = vmatmul.bf16.gmra.mxu0 %v160
    %v233 = vpop.f32.mrf.mxu0
    %v234 = vadd.f32 0.0, %v233
    %v235 = vpop.f32.mrf.mxu0
    %v236 = vadd.f32 0.0, %v235
    %237 = vdwg.mxu0
    %v238 = vpack.c.bf16 %v191, %v172
    %v239 = vpack.c.bf16 %v229, %v210
    %v240 = vpack.c.bf16 %v193, %v174
    %v241 = vpack.c.bf16 %v231, %v212
    %v242 = vpack.c.bf16 %v196, %v177
    %v243 = vpack.c.bf16 %v234, %v215
    %v244 = vpack.c.bf16 %v198, %v179
    %v245 = vpack.c.bf16 %v236, %v217
    %246 = vst [vmem:[#allocation7] sm:$0xff] %v238
    %247 = vst [vmem:[#allocation7 + $0x8] sm:$0xff] %v239
    %248 = vst [vmem:[#allocation7 + $0x10] sm:$0xff] %v240
    %249 = vst [vmem:[#allocation7 + $0x18] sm:$0xff] %v241
    %250 = vst [vmem:[#allocation7 + $0x20] sm:$0xff] %v242
    %251 = vst [vmem:[#allocation7 + $0x28] sm:$0xff] %v243
    %252 = vst [vmem:[#allocation7 + $0x30] sm:$0xff] %v244
    %253 = vst [vmem:[#allocation7 + $0x38] sm:$0xff] %v245
    // Predicated region
    $region18: #{tpu_custom_call.1} parent=1 // pred_check
      _
    $region19: #{tpu_custom_call.1} parent=1 // pred_check_branch
      %255 = sbr.rel (0) target = $region21
    $region20: #{tpu_custom_call.1} parent=1 // pred_region
      %257 = vsyncadd [#allocation4], 0
      %s258 = sshll.u32 [#allocation7], 4
      %s259 = int_to_ptr.vmem [resolvable:$true] %s258
      %s260 = sshll.u32 %s2, 4
      %s261 = int_to_ptr.hbm [resolvable:$true] %s260
      %266 = dma.vmem_to_hbm [thread:$0]  %s259, 1024, %s261, [#allocation4], 256, 256, 16
    $region21: #{tpu_custom_call.1} parent=1 // pred_fallthru
      _
    // Predicated region
    $region22: #{tpu_custom_call.1} parent=1 // pred_check
      _
    $region23: #{tpu_custom_call.1} parent=1 // pred_check_branch
      %268 = sbr.rel (0) target = $region25
    $region24: #{tpu_custom_call.1} parent=1 // pred_region
      %270 = dma.done [#allocation4], 1024
    $region25: #{tpu_custom_call.1} parent=1 // pred_fallthru
      _
    %271 = vsyncpa [#allocation3], 1
    %272 = vsyncpa [#allocation6], 1
    %273 = vsyncpa [#allocation4], 1

</llo_original>
